<compile_context>
chip_gen: v7x
topology: tpu7x:2x2x1
jax: 0.10.0
libtpu: 0.0.40
codegen_flags: <defaults>
</compile_context>

<pallas_src>
import jax
import jax.numpy as jnp
from jax.experimental import pallas as pl
from jax.experimental.pallas import tpu as pltpu


_LANE = 128
_SMALL_PROBLEM_BYTES = 1 << 20  # below this, XLA fusion beats kernel launch overhead


def _sublane_multiple(itemsize: int) -> int:
    # f32 -> 8, bf16 -> 16, int8/fp8 -> 32 rows per packed vreg.
    return {1: 32, 2: 16, 4: 8}.get(itemsize, 8)


def _vmem_capacity_bytes() -> int:
    try:
        return int(pltpu.get_tpu_info().vmem_capacity_bytes)
    except Exception:
        return 64 * 1024 * 1024  # conservative: v7x per-TensorCore physical VMEM


def _make_kernel(F, TF, n_f, may_need_mask):
    def kernel(x_ref, t_ref, o_ref, acc_ref):
        p = pl.program_id(1)
        f = pl.program_id(2)

        @pl.when(f == 0)
        def _():
            acc_ref[...] = jnp.zeros_like(acc_ref)

        diff = x_ref[...].astype(jnp.float32) - t_ref[...].astype(jnp.float32)

        if may_need_mask:
            # Only the tile(s) crossing the end of the feature axis pay for
            # iota/compare/select; all interior tiles take the plain path.
            tile_start = (p * n_f + f) * TF
            tail = tile_start + TF > F

            @pl.when(tail)
            def _():
                lane = jax.lax.broadcasted_iota(jnp.int32, diff.shape, 1)
                valid = (tile_start + lane) < F
                acc_ref[...] += jnp.sum(
                    jnp.where(valid, diff, jnp.float32(0.0)), axis=1, keepdims=True
                )

            @pl.when(jnp.logical_not(tail))
            def _():
                acc_ref[...] += jnp.sum(diff, axis=1, keepdims=True)
        else:
            acc_ref[...] += jnp.sum(diff, axis=1, keepdims=True)

        @pl.when(f == pl.num_programs(2) - 1)
        def _():
            # Signed per-(batch-row, parallel-group) partial sums.
            o_ref[0] = acc_ref[...]

    return kernel


def counting_mae_loss(inputs: jax.Array, targets: jax.Array, *,
                      force_pallas: bool = False,
                      block_budget_bytes: int | None = None) -> jax.Array:
    assert inputs.shape == targets.shape
    B = inputs.shape[0]

    # Flatten non-batch dims; trailing-dims reshape is free (no HBM copy).
    x = inputs.reshape(B, -1)
    t = targets.reshape(B, -1)
    F = x.shape[1]
    itemsize = x.dtype.itemsize

    # Small-problem fallback: launch/DMA overhead dwarfs the actual traffic.
    total_bytes = 2 * B * F * itemsize
    if not force_pallas and total_bytes < _SMALL_PROBLEM_BYTES:
        s = (jnp.sum(x.astype(jnp.float32), axis=1)
             - jnp.sum(t.astype(jnp.float32), axis=1))
        return jnp.mean(jnp.abs(s) * jnp.float32(1.0 / 400.0))

    sub = _sublane_multiple(itemsize)
    vmem_cap = _vmem_capacity_bytes()

    # Per-input block budget: ~VMEM/12 so 2 inputs x 2 buffers x block leave
    # headroom (v5e/v6e: ~10 MiB blocks; v7x: ~5 MiB blocks).
    if block_budget_bytes is None:
        budget = min(10 << 20, max(2 << 20, vmem_cap // 12))
    else:
        budget = int(block_budget_bytes)

    row_bytes = F * itemsize
    rows_fit = budget // max(row_bytes, 1)

    if (B <= rows_fit) or (rows_fit >= sub):
        # Full contiguous rows: one stride-free DMA per row group, no mask,
        # no feature grid dimension.
        TF = F
        if B <= rows_fit and B <= sub:
            TB = B  # full-dim exemption; batch too small to split into 2 blocks
        else:
            tb_fit = max(sub, (rows_fit // sub) * sub)
            # ceil(B/2) rounded up to the sublane multiple -> n_b >= 2 so both
            # v7x TensorCores get batch work whenever the batch allows it.
            tb_half = ((-(-B // 2) + sub - 1) // sub) * sub
            TB = max(sub, min(tb_fit, tb_half))
    else:
        # Rows too long for the budget: tile the feature axis (128-multiples).
        TB = B if B < sub else sub
        max_tf = max(_LANE, budget // (TB * itemsize))
        TF = F if max_tf >= F else (max_tf // _LANE) * _LANE

    n_b = pl.cdiv(B, TB)
    n_t = pl.cdiv(F, TF)

    # Small batch + large features: split feature tiles into 2 parallel groups
    # so the second v7x TensorCore is not idle.
    if n_b == 1 and n_t >= 2:
        n_p = 2
        n_f = pl.cdiv(n_t, n_p)
    else:
        n_p = 1
        n_f = n_t

    may_need_mask = (n_p * n_f * TF) > F       # feature tail and/or overhang tile
    clamp = (n_p * n_f) > n_t                  # overhang tile: clamp its block index

    def in_index_map(b, p, f):
        idx = p * n_f + f
        if clamp:
            idx = jnp.minimum(idx, n_t - 1)    # overhang tile is fully masked anyway
        return (b, idx)

    block_bytes = TB * TF * itemsize
    vmem_limit = int(min(vmem_cap * 9 // 10, 4 * block_bytes + (8 << 20)))
    vmem_limit = max(vmem_limit, 16 << 20)

    partials = pl.pallas_call(
        _make_kernel(F, TF, n_f, may_need_mask),
        out_shape=jax.ShapeDtypeStruct((n_p, B, 1), jnp.float32),
        grid_spec=pltpu.PrefetchScalarGridSpec(
            num_scalar_prefetch=0,
            grid=(n_b, n_p, n_f),
            in_specs=[
                pl.BlockSpec((TB, TF), in_index_map),
                pl.BlockSpec((TB, TF), in_index_map),
            ],
            out_specs=pl.BlockSpec((1, TB, 1), lambda b, p, f: (p, b, 0)),
            scratch_shapes=[pltpu.VMEM((TB, 1), jnp.float32)],
        ),
        compiler_params=pltpu.CompilerParams(
            dimension_semantics=("parallel", "parallel", "arbitrary"),
            vmem_limit_bytes=vmem_limit,
        ),
    )(x, t)

    # Tiny trailing combine: sum parallel-group partials, then abs/400/mean.
    per_sample = jnp.sum(partials, axis=(0, 2))          # (B,)
    return jnp.mean(jnp.abs(per_sample) * jnp.float32(1.0 / 400.0))


def counting_mae_loss_ref(inputs, targets):
    dims = tuple(range(1, inputs.ndim))
    return jnp.mean(
        jnp.abs(jnp.sum(inputs, axis=dims) / 400.0 - jnp.sum(targets, axis=dims) / 400.0)
    )


if __name__ == "__main__":
    key = jax.random.PRNGKey(0)
    k1, k2, k3, k4 = jax.random.split(key, 4)

    # Case 1: tiny density-map-like inputs, forced through the Pallas kernel
    # (full-rows path: TF = F, single block).
    x1 = jax.random.uniform(k1, (2, 4, 16, 16), dtype=jnp.float32)
    t1 = jax.random.uniform(k2, (2, 4, 16, 16), dtype=jnp.float32)
    out1 = counting_mae_loss(x1, t1, force_pallas=True)
    jax.block_until_ready(out1)
    ref1 = counting_mae_loss_ref(x1, t1)
    assert jnp.allclose(out1, ref1, rtol=1e-3, atol=1e-5), (out1, ref1)

    # Case 2: non-128-multiple feature size with a tiny forced block budget to
    # exercise feature tiling, the parallel feature-group split, and the
    # pl.when-gated tail mask.
    x2 = jax.random.uniform(k3, (4, 3, 40, 50), dtype=jnp.float32)
    t2 = jax.random.uniform(k4, (4, 3, 40, 50), dtype=jnp.float32)
    out2 = counting_mae_loss(x2, t2, force_pallas=True, block_budget_bytes=64 * 1024)
    jax.block_until_ready(out2)
    ref2 = counting_mae_loss_ref(x2, t2)
    assert jnp.allclose(out2, ref2, rtol=1e-3, atol=1e-5), (out2, ref2)

    # Case 3: small-problem fallback path (plain jnp, no pallas_call).
    out3 = counting_mae_loss(x1, t1)
    jax.block_until_ready(out3)
    assert jnp.allclose(out3, ref1, rtol=1e-3, atol=1e-5), (out3, ref1)

    print("KERNEL_OK")
</pallas_src>

<mosaic_0001>
module attributes {stable_mosaic.version = 11 : i64} {
  func.func @kernel(%arg0: i32, %arg1: i32, %arg2: i32, %arg3: memref<2x1024xf32, #tpu.memory_space<vmem>>, %arg4: memref<2x1024xf32, #tpu.memory_space<vmem>>, %arg5: memref<1x2x1xf32, #tpu.memory_space<vmem>>, %arg6: memref<2x1xf32, #tpu.memory_space<vmem>>) attributes {dimension_semantics = [#tpu.dimension_semantics<parallel>, #tpu.dimension_semantics<parallel>, #tpu.dimension_semantics<arbitrary>], iteration_bounds = array<i64: 1, 1, 1>, scalar_prefetch = 0 : i64, scratch_operands = 1 : i64, tpu.core_type = #tpu.core_type<tc>, window_params = [{transform_indices = @transform_0, window_bounds = array<i64: 2, 1024>}, {transform_indices = @transform_1, window_bounds = array<i64: 2, 1024>}, {transform_indices = @transform_2, window_bounds = array<i64: 1, 2, 1>}]} {
    %c0_i32 = arith.constant 0 : i32
    %0 = arith.cmpi eq, %arg2, %c0_i32 : i32
    %1 = arith.extui %0 : i1 to i32
    %c0_i32_0 = arith.constant 0 : i32
    %2 = arith.cmpi ne, %1, %c0_i32_0 : i32
    scf.if %2 {
      %cst_10 = arith.constant 0.000000e+00 : f32
      %14 = vector.broadcast %cst_10 : f32 to vector<2x1xf32>
      %c0_11 = arith.constant 0 : index
      %c0_12 = arith.constant 0 : index
      %15 = vector.load %arg6[%c0_11, %c0_12] : memref<2x1xf32, #tpu.memory_space<vmem>>, vector<2x1xf32>
      tpu.vector_store %arg6[%c0_11, %c0_12], %14 {strides = array<i32>} : memref<2x1xf32, #tpu.memory_space<vmem>>, vector<2x1xf32>,
    } else {
    }
    %c0 = arith.constant 0 : index
    %c0_1 = arith.constant 0 : index
    %3 = vector.load %arg3[%c0, %c0_1] : memref<2x1024xf32, #tpu.memory_space<vmem>>, vector<2x1024xf32>
    %c0_2 = arith.constant 0 : index
    %c0_3 = arith.constant 0 : index
    %4 = vector.load %arg4[%c0_2, %c0_3] : memref<2x1024xf32, #tpu.memory_space<vmem>>, vector<2x1024xf32>
    %5 = arith.subf %3, %4 : vector<2x1024xf32>
    %c0_4 = arith.constant 0 : index
    %c0_5 = arith.constant 0 : index
    %6 = vector.load %arg6[%c0_4, %c0_5] : memref<2x1xf32, #tpu.memory_space<vmem>>, vector<2x1xf32>
    %cst = arith.constant dense<0.000000e+00> : vector<2xf32>
    %7 = vector.multi_reduction <add>, %5, %cst [1] : vector<2x1024xf32> to vector<2xf32>
    %8 = vector.shape_cast %7 : vector<2xf32> to vector<2x1xf32>
    %9 = arith.addf %6, %8 : vector<2x1xf32>
    %c0_6 = arith.constant 0 : index
    %c0_7 = arith.constant 0 : index
    %10 = vector.load %arg6[%c0_6, %c0_7] : memref<2x1xf32, #tpu.memory_space<vmem>>, vector<2x1xf32>
    tpu.vector_store %arg6[%c0_6, %c0_7], %9 {strides = array<i32>} : memref<2x1xf32, #tpu.memory_space<vmem>>, vector<2x1xf32>,
    %c0_i32_8 = arith.constant 0 : i32
    %11 = arith.cmpi eq, %arg2, %c0_i32_8 : i32
    %12 = arith.extui %11 : i1 to i32
    %c0_i32_9 = arith.constant 0 : i32
    %13 = arith.cmpi ne, %12, %c0_i32_9 : i32
    scf.if %13 {
      %c0_10 = arith.constant 0 : index
      %c0_11 = arith.constant 0 : index
      %14 = vector.load %arg6[%c0_10, %c0_11] : memref<2x1xf32, #tpu.memory_space<vmem>>, vector<2x1xf32>
      %c0_12 = arith.constant 0 : index
      %c0_13 = arith.constant 0 : index
      %c0_14 = arith.constant 0 : index
      %15 = vector.load %arg5[%c0_12, %c0_13, %c0_14] : memref<1x2x1xf32, #tpu.memory_space<vmem>>, vector<1x2x1xf32>
      %16 = vector.shape_cast %15 : vector<1x2x1xf32> to vector<2x1xf32>
      %17 = vector.shape_cast %14 : vector<2x1xf32> to vector<1x2x1xf32>
      tpu.vector_store %arg5[%c0_12, %c0_13, %c0_14], %17 {strides = array<i32>} : memref<1x2x1xf32, #tpu.memory_space<vmem>>, vector<1x2x1xf32>,
    } else {
    }
    return
  }
  func.func @transform_0(%arg0: i32, %arg1: i32, %arg2: i32) -> (i32, i32) {
    %c1_i32 = arith.constant 1 : i32
    %0 = arith.muli %arg1, %c1_i32 : i32
    %1 = arith.addi %0, %arg2 : i32
    %c0_i32 = arith.constant 0 : i32
    return %arg0, %1 : i32, i32
  }
  func.func @transform_1(%arg0: i32, %arg1: i32, %arg2: i32) -> (i32, i32) {
    %c1_i32 = arith.constant 1 : i32
    %0 = arith.muli %arg1, %c1_i32 : i32
    %1 = arith.addi %0, %arg2 : i32
    %c0_i32 = arith.constant 0 : i32
    return %arg0, %1 : i32, i32
  }
  func.func @transform_2(%arg0: i32, %arg1: i32, %arg2: i32) -> (i32, i32, i32) {
    %c0_i32 = arith.constant 0 : i32
    %c0_i32_0 = arith.constant 0 : i32
    return %arg1, %arg0, %c0_i32 : i32, i32, i32
  }
}

</mosaic_0001>

<llo_original>
// kernel: tpu_custom_call.1
$region0: #{tpu_custom_call.1}
  #allocation0 [shape = 'u32[]', space=smem, size = 0x4, offset = 0x4, fixed_abs, tag = 'smem constant byte address 0x4 - core index']
  #allocation1 [shape = 'u32[144,128]{1,0:T(1,128)}', space=vmem, size = 0x12000, scoped, tag = 'internal scratch']
  #allocation2 [shape = 'f32[2,1]{1,0:T(2,128)}', space=vmem, size = 0x400, scoped, tag = 'scratch operand']
  %s0 = inlined_call_operand.hbm [shape: f32[2,1024], index: 0, kind: input, shape index: {}]
  %s1 = inlined_call_operand.hbm [shape: f32[2,1024], index: 1, kind: input, shape index: {}]
  %s2 = inlined_call_operand.vmem [shape: f32[1,2,1], index: 2, kind: output, shape index: {}]
  %s3 = sld [smem:[#allocation0]]
  $region34: #{tpu_custom_call.1} parent=0
    _
  %s5 = ssub.s32 1, %s3
  %s6 = scalar_select 0, %s5, %s3
  $region1: #{tpu_custom_call.1} parent=0
    #allocation3 [shape = 'u8[8192]{0}', space=vmem, size = 0x2000, scoped, tag = 'input window, operand 0, single buffered']
    #allocation4 [shape = 's32[1]{0}', space=sflag, size = 0x4, scoped, tag = 'scoped memory for tpu_custom_call.1']
    #allocation5 [shape = 'u8[8192]{0}', space=vmem, size = 0x2000, scoped, tag = 'input window, operand 1, single buffered']
    #allocation6 [shape = 's32[1]{0}', space=sflag, size = 0x4, scoped, tag = 'scoped memory for tpu_custom_call.1']
    %7 = vsyncpa [#allocation4], 0
    %8 = vsyncpa [#allocation6], 0
    // Predicated region
    $region2: #{tpu_custom_call.1} parent=1 // pred_check
      _
    $region3: #{tpu_custom_call.1} parent=1 // pred_check_branch
      %10 = sbr.rel (0) target = $region5
    $region4: #{tpu_custom_call.1} parent=1 // pred_region
      %s11 = sadd.s32 0, 0
      %s12 = smul.u32 8, %s11
      %s14 = ssub.s32 256, 256
      %15 = vsyncadd [#allocation4], %s14
      %s16 = smul.addr %s12, 32
      %s17 = scalar_lea.hbm %s0, %s16
      %s19 = sshll.u32 [#allocation3], 4
      %s20 = int_to_ptr.vmem [resolvable:$true] %s19
      %22 = dma.hbm_to_vmem [thread:$0]  %s17, 256, %s20, [#allocation4]
    $region5: #{tpu_custom_call.1} parent=1 // pred_fallthru
      _
    // Predicated region
    $region6: #{tpu_custom_call.1} parent=1 // pred_check
      _
    $region7: #{tpu_custom_call.1} parent=1 // pred_check_branch
      %24 = sbr.rel (0) target = $region9
    $region8: #{tpu_custom_call.1} parent=1 // pred_region
      %s25 = sadd.s32 0, 0
      %s26 = smul.u32 8, %s25
      %s28 = ssub.s32 256, 256
      %29 = vsyncadd [#allocation6], %s28
      %s30 = smul.addr %s26, 32
      %s31 = scalar_lea.hbm %s1, %s30
      %s33 = sshll.u32 [#allocation5], 4
      %s34 = int_to_ptr.vmem [resolvable:$true] %s33
      %36 = dma.hbm_to_vmem [thread:$0]  %s31, 256, %s34, [#allocation6]
    $region9: #{tpu_custom_call.1} parent=1 // pred_fallthru
      _
    // Predicated region
    $region10: #{tpu_custom_call.1} parent=1 // pred_check
      _
    $region11: #{tpu_custom_call.1} parent=1 // pred_check_branch
      %38 = sbr.rel (0) target = $region13
    $region12: #{tpu_custom_call.1} parent=1 // pred_region
      %39 = dma.done [#allocation4], 256
    $region13: #{tpu_custom_call.1} parent=1 // pred_fallthru
      _
    // Predicated region
    $region14: #{tpu_custom_call.1} parent=1 // pred_check
      _
    $region15: #{tpu_custom_call.1} parent=1 // pred_check_branch
      %41 = sbr.rel (0) target = $region17
    $region16: #{tpu_custom_call.1} parent=1 // pred_region
      %42 = dma.done [#allocation6], 256
    $region17: #{tpu_custom_call.1} parent=1 // pred_fallthru
      _
    %s43 = sadd.s32 0, 0
    %s44 = smul.u32 8, %s43
    %s45 = sadd.s32 0, 0
    %s46 = smul.u32 8, %s45
    %p47 = scmp.eq.s32.totalorder 0, 0
    // Predicated region
    $region18: #{tpu_custom_call.1} parent=1 // pred_check
      %p48 = pneg %p47
    $region19: #{tpu_custom_call.1} parent=1 // pred_check_branch
      %50 = sbr.rel (%p48) target = $region21
    $region20: #{tpu_custom_call.1} parent=1 // pred_region
      %vm51 = vcmask 1024
      %52 = vst.msk [vmem:[#allocation2] sm:$0x3] %vm51, 0.0
    $region21: #{tpu_custom_call.1} parent=1 // pred_fallthru
      _
    %v53 = vld [vmem:[#allocation3] sm:$0xff]
    %v54 = vld [vmem:[#allocation3 + $0x8] sm:$0xff]
    %v55 = vld [vmem:[#allocation5] sm:$0xff]
    %v56 = vld [vmem:[#allocation5 + $0x8] sm:$0xff]
    %v57 = vsub.f32 %v53, %v55
    %v58 = vsub.f32 %v54, %v56
    %v59 = vld [vmem:[#allocation2] sm:$0x3]
    %v62 = vcombine.high %v57, %v57
    %v64 = vunpack.c.l.s4 1983009808
    %v65 = vunpack.c.0.s8 %v64
    %v66 = vlaneseq
    %v67 = vshrl.u32 %v66, 7
    %v68 = vsub.s32 %v65, %v67
    %v69 = vrot.slane %v57, %v68
    %v71 = vunpack.c.l.s4 1983009808
    %v72 = vunpack.c.0.s8 %v71
    %v73 = vlaneseq
    %v74 = vshrl.u32 %v73, 7
    %v75 = vsub.s32 %v72, %v74
    %v76 = vrot.slane %v62, %v75
    %v77 = vcombine.high %v69, %v69
    %v78 = vcombine.high %v76, %v76
    %v79 = vcombine.high %v58, %v58
    %v81 = vunpack.c.l.s4 1983009808
    %v82 = vunpack.c.0.s8 %v81
    %v83 = vlaneseq
    %v84 = vshrl.u32 %v83, 7
    %v85 = vsub.s32 %v82, %v84
    %v86 = vrot.slane %v58, %v85
    %v88 = vunpack.c.l.s4 1983009808
    %v89 = vunpack.c.0.s8 %v88
    %v90 = vlaneseq
    %v91 = vshrl.u32 %v90, 7
    %v92 = vsub.s32 %v89, %v91
    %v93 = vrot.slane %v79, %v92
    %v94 = vcombine.high %v86, %v86
    %v95 = vcombine.high %v93, %v93
    %vm104 = vcmask 1041408
    %v105 = vsel %vm104, %v69, 0.0
    %v106 = vsel %vm104, %v77, 0.0
    %v107 = vadd.f32 %v105, %v106
    %v108 = vsel %vm104, %v76, 0.0
    %v109 = vadd.f32 %v107, %v108
    %v110 = vsel %vm104, %v78, 0.0
    %v111 = vadd.f32 %v109, %v110
    %v112 = vsel %vm104, %v86, 0.0
    %v113 = vadd.f32 %v111, %v112
    %v114 = vsel %vm104, %v94, 0.0
    %v115 = vadd.f32 %v113, %v114
    %v116 = vsel %vm104, %v93, 0.0
    %v117 = vadd.f32 %v115, %v116
    %v118 = vsel %vm104, %v95, 0.0
    %v119 = vadd.f32 %v117, %v118
    %120 = vadd.xlane.f32.xlu0 %v119
    %v121 = vpop.xlane.xlu0 %120
    %v122 = vadd.f32 %v59, %v121
    %vm123 = vcmask 1024
    %124 = vst.msk [vmem:[#allocation2] sm:$0x3] %vm123, %v122
    // Predicated region
    $region22: #{tpu_custom_call.1} parent=1 // pred_check
      %p125 = pneg %p47
    $region23: #{tpu_custom_call.1} parent=1 // pred_check_branch
      %127 = sbr.rel (%p125) target = $region25
    $region24: #{tpu_custom_call.1} parent=1 // pred_region
      %v128 = vld [vmem:[#allocation2] sm:$0x3]
      %129 = vst.msk [vmem:[%s2] sm:$0x3] %vm123, %v128
    $region25: #{tpu_custom_call.1} parent=1 // pred_fallthru
      _
    // Predicated region
    $region26: #{tpu_custom_call.1} parent=1 // pred_check
      _
    $region27: #{tpu_custom_call.1} parent=1 // pred_check_branch
      %131 = sbr.rel (0) target = $region29
    $region28: #{tpu_custom_call.1} parent=1 // pred_region
      _
    $region29: #{tpu_custom_call.1} parent=1 // pred_fallthru
      _
    // Predicated region
    $region30: #{tpu_custom_call.1} parent=1 // pred_check
      _
    $region31: #{tpu_custom_call.1} parent=1 // pred_check_branch
      %133 = sbr.rel (0) target = $region33
    $region32: #{tpu_custom_call.1} parent=1 // pred_region
      _
    $region33: #{tpu_custom_call.1} parent=1 // pred_fallthru
      _
    %134 = vsyncpa [#allocation4], 1
    %135 = vsyncpa [#allocation6], 1

</llo_original>
